<compile_context>
chip_gen: v6e
topology: v6e:2x2x1
jax: 0.10.0
libtpu: 0.0.40
codegen_flags: <defaults>
</compile_context>

<pallas_src>
import functools
import math

import jax
import jax.numpy as jnp
from jax.experimental import pallas as pl
from jax.experimental.pallas import tpu as pltpu

_LN10_OVER_10 = math.log(10.0) / 10.0

# Per-buffer tile budget. With double-buffered input + output this stays well
# under the 32 MiB scoped-VMEM default, so the same sizing is safe on
# v5e/v6e (128 MiB) and v7x (64 MiB physical).
_MAX_TILE_BYTES = 4 * 1024 * 1024


def _row_tile(B, L, itemsize=4):
    """Largest row tile (multiple of 8, full L) that fits the per-buffer budget."""
    rows = max(1, _MAX_TILE_BYTES // max(1, L * itemsize))
    if rows >= B or B <= 8:
        return B
    return max(8, (rows // 8) * 8)


# ----------------------------------------------------------------------------
# In-kernel helpers
# ----------------------------------------------------------------------------
def _normalize_tile(x, method, lo, hi):
    """Row-wise normalization of one (TB, L) tile (rows are independent)."""
    if method == "minmax":
        row_min = jnp.min(x, axis=1, keepdims=True)
        row_max = jnp.max(x, axis=1, keepdims=True)
        rng = row_max - row_min
        rng = jnp.where(rng == 0.0, jnp.ones_like(rng), rng)  # torch.where guard
        # Per-row reciprocal (TB divides) with the (hi-lo) scale folded in,
        # instead of a full-tile divide + extra full-tile multiply.
        scale = (hi - lo) / rng
        return (x - row_min) * scale + lo
    elif method == "zscore":
        mean = jnp.mean(x, axis=1, keepdims=True)
        var = jnp.mean((x - mean) * (x - mean), axis=1, keepdims=True)  # unbiased=False
        var = jnp.where(var == 0.0, jnp.ones_like(var), var)  # std==0 -> divide by 1
        inv_std = jax.lax.rsqrt(var)  # one EUP rsqrt per row replaces sqrt + divide
        return (x - mean) * inv_std
    raise ValueError(method)


def _feat_init(acc_ref):
    acc_ref[0] = jnp.float32(0.0)          # sum(x)
    acc_ref[1] = jnp.float32(0.0)          # sum(x*x)
    acc_ref[2] = jnp.float32(jnp.inf)      # min(x)
    acc_ref[3] = jnp.float32(-jnp.inf)     # max(x)
    acc_ref[4] = jnp.float32(0.0)          # sum(lin)
    acc_ref[5] = jnp.float32(0.0)          # sum(lin*lin)
    acc_ref[6] = jnp.float32(0.0)          # has_nan
    acc_ref[7] = jnp.float32(0.0)          # has_inf


def _feat_accumulate(x, valid, acc_ref):
    """Single-pass accumulation for one (TB, L) tile with row-validity mask."""
    xz = jnp.where(valid, x, 0.0)
    acc_ref[0] += jnp.sum(xz)
    acc_ref[1] += jnp.sum(xz * xz)
    acc_ref[2] = jnp.minimum(acc_ref[2], jnp.min(jnp.where(valid, x, jnp.inf)))
    acc_ref[3] = jnp.maximum(acc_ref[3], jnp.max(jnp.where(valid, x, -jnp.inf)))
    lin = jnp.exp(x * _LN10_OVER_10)       # 10 ** (csi / 10), on the EUP
    linz = jnp.where(valid, lin, 0.0)
    acc_ref[4] += jnp.sum(linz)
    acc_ref[5] += jnp.sum(linz * linz)
    # Fold the validate_csi NaN/Inf scan into this pass (no extra HBM read).
    acc_ref[6] = jnp.maximum(acc_ref[6], jnp.max(jnp.isnan(xz).astype(jnp.float32)))
    acc_ref[7] = jnp.maximum(acc_ref[7], jnp.max(jnp.isinf(xz).astype(jnp.float32)))


def _feat_finalize(acc_ref, feat_ref, n):
    inv_n = 1.0 / n
    # TODO(synk): for n==1 PyTorch's unbiased std returns NaN; we guard to 0.
    inv_nm1 = 1.0 / max(n - 1.0, 1.0)
    mean = acc_ref[0] * inv_n
    var = jnp.maximum((acc_ref[1] - n * mean * mean) * inv_nm1, 0.0)
    lmean = acc_ref[4] * inv_n
    lvar = jnp.maximum((acc_ref[5] - n * lmean * lmean) * inv_nm1, 0.0)
    feat_ref[0] = mean
    feat_ref[1] = jnp.sqrt(var)
    feat_ref[2] = acc_ref[2]
    feat_ref[3] = acc_ref[3]
    feat_ref[4] = lmean
    feat_ref[5] = jnp.sqrt(lvar)
    feat_ref[6] = acc_ref[6]
    feat_ref[7] = acc_ref[7]


# ----------------------------------------------------------------------------
# Kernels
# ----------------------------------------------------------------------------
def _normalize_kernel(csi_ref, out_ref, *, method, lo, hi):
    out_ref[...] = _normalize_tile(csi_ref[...], method, lo, hi).astype(out_ref.dtype)


def _features_kernel(csi_ref, feat_ref, acc_ref, *, n, rows_total, tb):
    i = pl.program_id(0)

    @pl.when(i == 0)
    def _():
        _feat_init(acc_ref)

    x = csi_ref[...]
    # Mask rows of a partial last tile out of the global reductions.
    row_ids = jax.lax.broadcasted_iota(jnp.int32, x.shape, 0) + i * tb
    valid = row_ids < rows_total
    _feat_accumulate(x, valid, acc_ref)

    @pl.when(i == pl.num_programs(0) - 1)
    def _():
        _feat_finalize(acc_ref, feat_ref, n)


def _fused_kernel(csi_ref, out_ref, feat_ref, acc_ref, *, method, lo, hi, n, rows_total, tb):
    """normalize + extract_csi_features in one HBM pass."""
    i = pl.program_id(0)

    @pl.when(i == 0)
    def _():
        _feat_init(acc_ref)

    x = csi_ref[...]
    out_ref[...] = _normalize_tile(x, method, lo, hi).astype(out_ref.dtype)
    row_ids = jax.lax.broadcasted_iota(jnp.int32, x.shape, 0) + i * tb
    valid = row_ids < rows_total
    _feat_accumulate(x, valid, acc_ref)

    @pl.when(i == pl.num_programs(0) - 1)
    def _():
        _feat_finalize(acc_ref, feat_ref, n)


# ----------------------------------------------------------------------------
# Wrappers (validation, spec plumbing, dict assembly stay in plain JAX/Python)
# ----------------------------------------------------------------------------
def normalize_csi(csi, method="minmax", target_range=(0.0, 1.0), row_tile=None):
    """Pallas implementation of ChannelAwareBaseModel.normalize_csi for 2-D CSI."""
    assert csi.ndim == 2, "kernel handles the csi.dim() >= 2 branch (row-wise reductions)"
    if method == "none":
        return csi
    if method not in ("minmax", "zscore"):
        raise ValueError(f"Unsupported normalization method: {method}")

    B, L = csi.shape
    tb = row_tile if row_tile is not None else _row_tile(B, L, csi.dtype.itemsize)
    lo, hi = float(target_range[0]), float(target_range[1])
    spec = pl.BlockSpec((tb, L), lambda i: (i, 0))
    nbytes = csi.size * csi.dtype.itemsize

    return pl.pallas_call(
        functools.partial(_normalize_kernel, method=method, lo=lo, hi=hi),
        out_shape=jax.ShapeDtypeStruct((B, L), csi.dtype),
        grid=(pl.cdiv(B, tb),),
        in_specs=[spec],
        out_specs=spec,
        # Rows are independent -> parallel axis (sharded across both TCs on v7x).
        compiler_params=pltpu.CompilerParams(dimension_semantics=("parallel",)),
        cost_estimate=pl.CostEstimate(
            flops=6 * B * L, transcendentals=B, bytes_accessed=2 * nbytes
        ),
    )(csi)


def _features_vec(csi, row_tile=None):
    B, L = csi.shape
    tb = row_tile if row_tile is not None else _row_tile(B, L, csi.dtype.itemsize)
    nbytes = csi.size * csi.dtype.itemsize

    return pl.pallas_call(
        functools.partial(_features_kernel, n=float(csi.size), rows_total=B, tb=tb),
        out_shape=jax.ShapeDtypeStruct((8,), jnp.float32),
        grid=(pl.cdiv(B, tb),),
        in_specs=[pl.BlockSpec((tb, L), lambda i: (i, 0))],
        out_specs=pl.BlockSpec(memory_space=pltpu.SMEM),   # resident scalar output
        scratch_shapes=[pltpu.SMEM((8,), jnp.float32)],    # running accumulators
        # Accumulator carries across the grid -> reduction axis is "arbitrary".
        compiler_params=pltpu.CompilerParams(dimension_semantics=("arbitrary",)),
        cost_estimate=pl.CostEstimate(
            flops=10 * B * L, transcendentals=B * L, bytes_accessed=nbytes + 32
        ),
    )(csi)


def _assemble_features(vec, csi):
    return {
        "mean": vec[0],
        "std": vec[1],
        "min": vec[2],
        "max": vec[3],
        "linear_mean": vec[4],
        "linear_std": vec[5],
        "has_nan": vec[6],
        "has_inf": vec[7],
        # metadata "features" (shape / numel) are not tensor compute:
        "shape": jnp.array(csi.shape, dtype=jnp.int32),
        "numel": jnp.array(csi.size, dtype=jnp.int32),
    }


def extract_csi_features(csi, row_tile=None):
    """Pallas implementation of ChannelAwareBaseModel.extract_csi_features (real CSI)."""
    assert csi.ndim == 2
    return _assemble_features(_features_vec(csi, row_tile), csi)


def normalize_and_extract_csi(csi, method="minmax", target_range=(0.0, 1.0), row_tile=None):
    """Fused normalize_csi + extract_csi_features: one HBM read instead of two."""
    assert csi.ndim == 2
    if method not in ("minmax", "zscore"):
        raise ValueError(f"Unsupported normalization method: {method}")
    B, L = csi.shape
    tb = row_tile if row_tile is not None else _row_tile(B, L, csi.dtype.itemsize)
    lo, hi = float(target_range[0]), float(target_range[1])
    spec = pl.BlockSpec((tb, L), lambda i: (i, 0))
    nbytes = csi.size * csi.dtype.itemsize

    normed, vec = pl.pallas_call(
        functools.partial(_fused_kernel, method=method, lo=lo, hi=hi,
                          n=float(csi.size), rows_total=B, tb=tb),
        out_shape=(jax.ShapeDtypeStruct((B, L), csi.dtype),
                   jax.ShapeDtypeStruct((8,), jnp.float32)),
        grid=(pl.cdiv(B, tb),),
        in_specs=[spec],
        out_specs=(spec, pl.BlockSpec(memory_space=pltpu.SMEM)),
        scratch_shapes=[pltpu.SMEM((8,), jnp.float32)],
        compiler_params=pltpu.CompilerParams(dimension_semantics=("arbitrary",)),
        cost_estimate=pl.CostEstimate(
            flops=16 * B * L, transcendentals=B * L, bytes_accessed=2 * nbytes + 32
        ),
    )(csi)
    return normed, _assemble_features(vec, csi)


def validate_csi(csi, expected_shape=None, features=None):
    """validate_csi: shape checks host-side; NaN/Inf comes from the features pass if given."""
    if csi.size == 0:
        raise ValueError("CSI tensor cannot be empty")
    if expected_shape is not None and tuple(csi.shape) != tuple(expected_shape):
        raise ValueError(f"CSI shape mismatch. Expected {expected_shape}, got {csi.shape}")
    if features is not None and "has_nan" in features:
        has_nan = bool(features["has_nan"] > 0)
        has_inf = bool(features["has_inf"] > 0)
    else:
        # TODO(synk): standalone path costs two extra HBM passes + host syncs;
        # prefer passing the dict from extract_csi_features (has_nan/has_inf).
        has_nan = bool(jnp.isnan(csi).any())
        has_inf = bool(jnp.isinf(csi).any())
    if has_nan:
        raise ValueError("CSI tensor contains NaN values")
    if has_inf:
        raise ValueError("CSI tensor contains infinite values")
    return csi


def create_csi_for_submodules(csi, num_modules):
    """create_csi_for_submodules: pure replication, plain JAX."""
    if num_modules <= 0:
        return []
    return [jnp.array(csi) for _ in range(num_modules)]


# TODO(synk): transform_csi / forward_csi_to_submodules / format_csi_for_channel /
# extract_csi_from_channel_output are host-side reshape & control-flow plumbing
# with no tensor compute worth a kernel; left to plain Python/JAX callers.


# ----------------------------------------------------------------------------
# Reference (plain jnp) for correctness checks
# ----------------------------------------------------------------------------
def _ref_minmax(csi, lo, hi):
    mn = jnp.min(csi, axis=1, keepdims=True)
    mx = jnp.max(csi, axis=1, keepdims=True)
    rng = jnp.where(mx - mn == 0, 1.0, mx - mn)
    return (csi - mn) / rng * (hi - lo) + lo


def _ref_zscore(csi):
    mean = jnp.mean(csi, axis=1, keepdims=True)
    std = jnp.std(csi, axis=1, keepdims=True)
    std = jnp.where(std == 0, 1.0, std)
    return (csi - mean) / std


if __name__ == "__main__":
    key = jax.random.PRNGKey(0)
    B, L = 8, 128  # (batch, csi_length) — sublane x lane friendly
    # CSI in dB, roughly SNR-like values in [-5, 25] dB
    csi = jax.random.uniform(key, (B, L), dtype=jnp.float32, minval=-5.0, maxval=25.0)

    out_minmax = normalize_csi(csi, method="minmax", target_range=(0.0, 1.0))
    out_zscore = normalize_csi(csi, method="zscore")
    feats = extract_csi_features(csi)
    csi = validate_csi(csi, features=feats)  # NaN/Inf folded into the features pass
    fused_norm, fused_feats = normalize_and_extract_csi(csi, method="minmax")

    jax.block_until_ready((out_minmax, out_zscore, fused_norm))
    jax.block_until_ready(feats["linear_std"])

    # sanity-check against plain-JAX reference
    n = csi.size
    lin = 10.0 ** (csi / 10.0)
    assert jnp.allclose(out_minmax, _ref_minmax(csi, 0.0, 1.0), atol=1e-5, rtol=1e-5)
    assert jnp.allclose(out_zscore, _ref_zscore(csi), atol=1e-4, rtol=1e-4)
    assert jnp.allclose(feats["mean"], jnp.mean(csi), atol=1e-4, rtol=1e-4)
    assert jnp.allclose(
        feats["std"], jnp.sqrt(jnp.sum((csi - jnp.mean(csi)) ** 2) / (n - 1)), atol=1e-3, rtol=1e-3
    )
    assert jnp.allclose(feats["min"], jnp.min(csi)) and jnp.allclose(feats["max"], jnp.max(csi))
    assert jnp.allclose(feats["linear_mean"], jnp.mean(lin), atol=1e-2, rtol=1e-3)
    assert float(feats["has_nan"]) == 0.0 and float(feats["has_inf"]) == 0.0
    assert jnp.allclose(fused_norm, out_minmax, atol=1e-5, rtol=1e-5)
    assert jnp.allclose(fused_feats["mean"], feats["mean"], atol=1e-4, rtol=1e-4)

    # exercise the multi-tile path (grid > 1: pipelined tiles + SMEM accumulator carry)
    B2, L2 = 32, 256
    csi2 = jax.random.normal(jax.random.PRNGKey(1), (B2, L2), dtype=jnp.float32) * 5.0 + 10.0
    out2 = normalize_csi(csi2, method="minmax", target_range=(-1.0, 1.0), row_tile=8)
    feats2 = extract_csi_features(csi2, row_tile=8)
    jax.block_until_ready(out2)
    jax.block_until_ready(feats2["std"])
    n2 = csi2.size
    assert jnp.allclose(out2, _ref_minmax(csi2, -1.0, 1.0), atol=1e-5, rtol=1e-5)
    assert jnp.allclose(feats2["mean"], jnp.mean(csi2), atol=1e-3, rtol=1e-4)
    assert jnp.allclose(
        feats2["std"], jnp.sqrt(jnp.sum((csi2 - jnp.mean(csi2)) ** 2) / (n2 - 1)),
        atol=1e-2, rtol=1e-3,
    )
    assert jnp.allclose(feats2["min"], jnp.min(csi2)) and jnp.allclose(feats2["max"], jnp.max(csi2))
    assert jnp.allclose(feats2["linear_mean"], jnp.mean(10.0 ** (csi2 / 10.0)),
                        atol=1e-1, rtol=1e-3)

    print("KERNEL_OK")
</pallas_src>

<mosaic_0001>
module attributes {stable_mosaic.version = 11 : i64} {
  func.func @_normalize_kernel(%arg0: i32, %arg1: memref<8x128xf32, #tpu.memory_space<vmem>>, %arg2: memref<8x128xf32, #tpu.memory_space<vmem>>) attributes {dimension_semantics = [#tpu.dimension_semantics<parallel>], iteration_bounds = array<i64: 1>, scalar_prefetch = 0 : i64, scratch_operands = 0 : i64, tpu.core_type = #tpu.core_type<tc>, window_params = [{transform_indices = @transform_0, window_bounds = array<i64: 8, 128>}, {transform_indices = @transform_1, window_bounds = array<i64: 8, 128>}]} {
    %c0 = arith.constant 0 : index
    %c0_0 = arith.constant 0 : index
    %0 = vector.load %arg1[%c0, %c0_0] : memref<8x128xf32, #tpu.memory_space<vmem>>, vector<8x128xf32>
    %cst = arith.constant dense<0x7F800000> : vector<8xf32>
    %1 = vector.multi_reduction <minimumf>, %0, %cst [1] : vector<8x128xf32> to vector<8xf32>
    %2 = vector.shape_cast %1 : vector<8xf32> to vector<8x1xf32>
    %cst_1 = arith.constant dense<0xFF800000> : vector<8xf32>
    %3 = vector.multi_reduction <maximumf>, %0, %cst_1 [1] : vector<8x128xf32> to vector<8xf32>
    %4 = vector.shape_cast %3 : vector<8xf32> to vector<8x1xf32>
    %5 = arith.subf %4, %2 : vector<8x1xf32>
    %cst_2 = arith.constant 0.000000e+00 : f32
    %6 = vector.broadcast %cst_2 : f32 to vector<8x1xf32>
    %7 = arith.cmpf oeq, %5, %6 : vector<8x1xf32>
    %cst_3 = arith.constant 1.000000e+00 : f32
    %8 = vector.broadcast %cst_3 : f32 to vector<8x1xf32>
    %9 = arith.select %7, %8, %5 : vector<8x1xi1>, vector<8x1xf32>
    %cst_4 = arith.constant 1.000000e+00 : f32
    %10 = vector.broadcast %cst_4 : f32 to vector<8x1xf32>
    %11 = arith.divf %10, %9 : vector<8x1xf32>
    %12 = vector.broadcast %2 : vector<8x1xf32> to vector<8x128xf32>
    %13 = arith.subf %0, %12 : vector<8x128xf32>
    %14 = vector.broadcast %11 : vector<8x1xf32> to vector<8x128xf32>
    %15 = arith.mulf %13, %14 : vector<8x128xf32>
    %cst_5 = arith.constant 0.000000e+00 : f32
    %16 = vector.broadcast %cst_5 : f32 to vector<8x128xf32>
    %17 = arith.addf %15, %16 : vector<8x128xf32>
    %c0_6 = arith.constant 0 : index
    %c0_7 = arith.constant 0 : index
    %18 = vector.load %arg2[%c0_6, %c0_7] : memref<8x128xf32, #tpu.memory_space<vmem>>, vector<8x128xf32>
    tpu.vector_store %arg2[%c0_6, %c0_7], %17 {strides = array<i32>} : memref<8x128xf32, #tpu.memory_space<vmem>>, vector<8x128xf32>,
    return
  }
  func.func @transform_0(%arg0: i32) -> (i32, i32) {
    %c0_i32 = arith.constant 0 : i32
    %c0_i32_0 = arith.constant 0 : i32
    return %arg0, %c0_i32 : i32, i32
  }
  func.func @transform_1(%arg0: i32) -> (i32, i32) {
    %c0_i32 = arith.constant 0 : i32
    %c0_i32_0 = arith.constant 0 : i32
    return %arg0, %c0_i32 : i32, i32
  }
}

</mosaic_0001>

<llo_original>
// kernel: tpu_custom_call.1
$region0: #{tpu_custom_call.1}
  #allocation0 [shape = 'u32[]', space=smem, size = 0x4, offset = 0x4, fixed_abs, tag = 'smem constant byte address 0x4 - core index']
  #allocation1 [shape = 'u32[144,128]{1,0:T(1,128)}', space=vmem, size = 0x12000, scoped, tag = 'internal scratch']
  %s0 = inlined_call_operand.hbm [shape: f32[8,128], index: 0, kind: input, shape index: {}]
  %s1 = inlined_call_operand.hbm [shape: f32[8,128], index: 1, kind: output, shape index: {}]
  %s2 = sld [smem:[#allocation0]]
  $region18: #{tpu_custom_call.1} parent=0
    _
  %s4 = ssub.s32 1, %s2
  %s5 = scalar_select 0, %s4, %s2
  $region1: #{tpu_custom_call.1} parent=0
    #allocation2 [shape = 'u8[4096]{0}', space=vmem, size = 0x1000, scoped, tag = 'input window, operand 0, single buffered']
    #allocation3 [shape = 's32[1]{0}', space=sflag, size = 0x4, scoped, tag = 'scoped memory for tpu_custom_call.1']
    #allocation4 [shape = 's32[1]{0}', space=sflag, size = 0x4, scoped, tag = 'scoped memory for tpu_custom_call.1']
    #allocation5 [shape = 'u8[4096]{0}', space=vmem, size = 0x1000, scoped, tag = 'output window, operand 0, single buffered']
    %6 = vsyncpa [#allocation3], 0
    %7 = vsyncpa [#allocation4], 0
    // Predicated region
    $region2: #{tpu_custom_call.1} parent=1 // pred_check
      _
    $region3: #{tpu_custom_call.1} parent=1 // pred_check_branch
      %9 = sbr.rel (0) target = $region5
    $region4: #{tpu_custom_call.1} parent=1 // pred_region
      %s11 = ssub.s32 128, 128
      %12 = vsyncadd [#allocation3], %s11
      %s14 = sshll.u32 [#allocation2], 4
      %s15 = int_to_ptr.vmem [resolvable:$true] %s14
      %17 = dma.hbm_to_vmem [thread:$0]  %s0, 128, %s15, [#allocation3]
    $region5: #{tpu_custom_call.1} parent=1 // pred_fallthru
      _
    // Predicated region
    $region6: #{tpu_custom_call.1} parent=1 // pred_check
      _
    $region7: #{tpu_custom_call.1} parent=1 // pred_check_branch
      %19 = sbr.rel (0) target = $region9
    $region8: #{tpu_custom_call.1} parent=1 // pred_region
      %20 = dma.done [#allocation3], 128
    $region9: #{tpu_custom_call.1} parent=1 // pred_fallthru
      _
    %v21 = vld [vmem:[#allocation2] sm:$0xff]
    %22 = vmin.xlane.f32.xlu0 %v21
    %v23 = vpop.xlane.xlu0 %22
    %24 = vmax.xlane.f32.xlu0 %v21
    %v25 = vpop.xlane.xlu0 %24
    %v26 = vsub.f32 %v25, %v23
    %vm27 = vcmp.eq.f32.partialorder %v26, 0.0
    %v28 = vsel %vm27, 1.0, %v26
    %v29 = vrcp.pop %v28
    %v30 = vmul.f32 1.0, %v29
    %v31 = vsub.f32 %v21, %v23
    %v32 = vmul.f32 %v31, %v30
    %v33 = vadd.f32 %v32, 0.0
    %34 = vst [vmem:[#allocation5] sm:$0xff] %v33
    // Predicated region
    $region10: #{tpu_custom_call.1} parent=1 // pred_check
      _
    $region11: #{tpu_custom_call.1} parent=1 // pred_check_branch
      %36 = sbr.rel (0) target = $region13
    $region12: #{tpu_custom_call.1} parent=1 // pred_region
      %s38 = ssub.s32 128, 128
      %39 = vsyncadd [#allocation4], %s38
      %s41 = sshll.u32 [#allocation5], 4
      %s42 = int_to_ptr.vmem [resolvable:$true] %s41
      %44 = dma.vmem_to_hbm [thread:$0]  %s42, 128, %s1, [#allocation4]
    $region13: #{tpu_custom_call.1} parent=1 // pred_fallthru
      _
    // Predicated region
    $region14: #{tpu_custom_call.1} parent=1 // pred_check
      _
    $region15: #{tpu_custom_call.1} parent=1 // pred_check_branch
      %46 = sbr.rel (0) target = $region17
    $region16: #{tpu_custom_call.1} parent=1 // pred_region
      %47 = dma.done [#allocation4], 128
    $region17: #{tpu_custom_call.1} parent=1 // pred_fallthru
      _
    %48 = vsyncpa [#allocation3], 1
    %49 = vsyncpa [#allocation4], 1

</llo_original>
